<compile_context>
chip_gen: v7x
topology: tpu7x:2x2x1
jax: 0.10.0
libtpu: 0.0.40
codegen_flags: <defaults>
</compile_context>

<pallas_src>
import jax
import jax.numpy as jnp
from jax.experimental import pallas as pl
from jax.experimental.pallas import tpu as pltpu


# ---------------------------------------------------------------------------
# Lane-dense flattened kernels: output block is (TB, C*H).
# wsel / dsel are block-diagonal "placed" matrices built in the wrapper:
#   wsel[c, c*H:(c+1)*H] = W[c, :]
#   dsel[c, c*H:(c+1)*H] = mask_emb - bias[c, :]
# so   out_flat = (x*(1-m)) @ wsel + m @ dsel + bias_flat
# which equals  (1-m)*(x*W + bias) + m*emb  exactly.
# The "@" is realized as a static unrolled loop of broadcast-FMAs on the VPU
# (C is small for tabular numerical columns), keeping everything 2-D.
# ---------------------------------------------------------------------------
def _flat_kernel_masked(x_ref, m_ref, wsel_ref, dsel_ref, b_ref, o_ref):
    x = x_ref[...]                    # (TB, C)
    m = m_ref[...]                    # (TB, C)
    xm = x * (1.0 - m)                # fold (1-mask) into x once per column
    C = x_ref.shape[1]
    acc = xm[:, 0:1] * wsel_ref[0:1, :] + m[:, 0:1] * dsel_ref[0:1, :]
    for c in range(1, C):             # static unroll over columns
        acc = acc + xm[:, c:c + 1] * wsel_ref[c:c + 1, :] \
                  + m[:, c:c + 1] * dsel_ref[c:c + 1, :]
    o_ref[...] = (acc + b_ref[...]).astype(o_ref.dtype)


def _flat_kernel_nomask(x_ref, wsel_ref, b_ref, o_ref):
    x = x_ref[...]                    # (TB, C)
    C = x_ref.shape[1]
    acc = x[:, 0:1] * wsel_ref[0:1, :]
    for c in range(1, C):
        acc = acc + x[:, c:c + 1] * wsel_ref[c:c + 1, :]
    o_ref[...] = (acc + b_ref[...]).astype(o_ref.dtype)


# ---------------------------------------------------------------------------
# 3-D fallback kernels (used when H is already a multiple of 128, or C is so
# large that the placed matrices would be wasteful).  Output block (TB, C, H).
# ---------------------------------------------------------------------------
def _block_kernel_masked(x_ref, m_ref, w_ref, b_ref, emb_ref, o_ref):
    x = x_ref[...]                                   # (TB, C, 1)
    m = m_ref[...]                                   # (TB, C, 1)
    feats = x * w_ref[...] + b_ref[...]              # (TB, C, H)
    o_ref[...] = (feats + m * (emb_ref[...] - feats)).astype(o_ref.dtype)


def _block_kernel_nomask(x_ref, w_ref, b_ref, o_ref):
    x = x_ref[...]                                   # (TB, C, 1)
    o_ref[...] = (x * w_ref[...] + b_ref[...]).astype(o_ref.dtype)


def _choose_tb(batch, out_row_bytes):
    """Rows per grid step: target ~2 MiB output blocks, cap 512, multiple of 8."""
    tb = (2 * 1024 * 1024) // max(int(out_row_bytes), 1)
    tb = int(min(512, max(8, tb)))
    tb = (tb // 8) * 8
    if batch <= tb:
        return batch                  # one block covering the whole batch
    return tb


def feature_tokenizer(x_numerical, weights, biases, mask_embedding, mask=None,
                      out_dtype=None):
    """FeatureTokenizer forward.

    x_numerical   : [B, C] float
    weights       : [C, H]  (stacked per-column nn.Linear(1, H) weights)
    biases        : [C, H]  (stacked per-column nn.Linear(1, H) biases)
    mask_embedding: [1, H]
    mask          : [B, C] (0/1 floats) or None
    out_dtype     : output dtype (default: dtype of x). Pass jnp.bfloat16 to
                    halve HBM writeback if downstream accepts it.
    returns       : [B, C, H]
    """
    B, C = x_numerical.shape
    H = weights.shape[1]
    CH = C * H
    if out_dtype is None:
        out_dtype = x_numerical.dtype
    out_bytes = jnp.dtype(out_dtype).itemsize

    x = x_numerical.astype(jnp.float32)
    w = weights.astype(jnp.float32)
    b = biases.astype(jnp.float32)
    emb = mask_embedding.reshape(1, H).astype(jnp.float32)
    masked = mask is not None

    sem = pltpu.CompilerParams(dimension_semantics=("parallel",))
    tb = _choose_tb(B, CH * out_bytes)
    grid = (pl.cdiv(B, tb),)

    # Lane-dense flattened path (H not a multiple of 128, placed matrices small).
    use_flat = (H % 128 != 0) and (C * CH * 4 <= 4 * 1024 * 1024)

    if use_flat:
        eye = jnp.eye(C, dtype=jnp.float32)
        wsel = (eye[:, :, None] * w[None, :, :]).reshape(C, CH)
        b_flat = b.reshape(1, CH)

        x_spec = pl.BlockSpec((tb, C), lambda i: (i, 0))
        sel_spec = pl.BlockSpec((C, CH), lambda i: (0, 0))
        bias_spec = pl.BlockSpec((1, CH), lambda i: (0, 0))
        out_spec = pl.BlockSpec((tb, CH), lambda i: (i, 0))
        out_shape = jax.ShapeDtypeStruct((B, CH), out_dtype)

        n_in = B * C * (2 if masked else 1)
        cost = pl.CostEstimate(
            flops=(4 if masked else 2) * B * CH,
            transcendentals=0,
            bytes_accessed=out_bytes * B * CH
                           + 4 * (n_in + (2 if masked else 1) * C * CH + CH),
        )

        if masked:
            m = mask.astype(jnp.float32)
            dsel = (eye[:, :, None] * (emb - b)[None, :, :]).reshape(C, CH)
            out_flat = pl.pallas_call(
                _flat_kernel_masked,
                out_shape=out_shape,
                grid=grid,
                in_specs=[x_spec, x_spec, sel_spec, sel_spec, bias_spec],
                out_specs=out_spec,
                compiler_params=sem,
                cost_estimate=cost,
            )(x, m, wsel, dsel, b_flat)
        else:
            out_flat = pl.pallas_call(
                _flat_kernel_nomask,
                out_shape=out_shape,
                grid=grid,
                in_specs=[x_spec, sel_spec, bias_spec],
                out_specs=out_spec,
                compiler_params=sem,
                cost_estimate=cost,
            )(x, wsel, b_flat)
        return out_flat.reshape(B, C, H)   # metadata-only reshape

    # ----- 3-D fallback path -----
    x3 = x.reshape(B, C, 1)
    x_spec = pl.BlockSpec((tb, C, 1), lambda i: (i, 0, 0))
    w_spec = pl.BlockSpec((C, H), lambda i: (0, 0))
    emb_spec = pl.BlockSpec((1, H), lambda i: (0, 0))
    out_spec = pl.BlockSpec((tb, C, H), lambda i: (i, 0, 0))
    out_shape = jax.ShapeDtypeStruct((B, C, H), out_dtype)
    cost = pl.CostEstimate(
        flops=(5 if masked else 2) * B * CH,
        transcendentals=0,
        bytes_accessed=out_bytes * B * CH
                       + 4 * (B * C * (2 if masked else 1) + 2 * C * H + H),
    )
    if masked:
        m3 = mask.astype(jnp.float32).reshape(B, C, 1)
        return pl.pallas_call(
            _block_kernel_masked,
            out_shape=out_shape,
            grid=grid,
            in_specs=[x_spec, x_spec, w_spec, w_spec, emb_spec],
            out_specs=out_spec,
            compiler_params=sem,
            cost_estimate=cost,
        )(x3, m3, w, b, emb)
    return pl.pallas_call(
        _block_kernel_nomask,
        out_shape=out_shape,
        grid=grid,
        in_specs=[x_spec, w_spec, w_spec],
        out_specs=out_spec,
        compiler_params=sem,
        cost_estimate=cost,
    )(x3, w, b)


if __name__ == "__main__":
    # Small shapes consistent with the module.
    B = 8            # batch
    C = 4            # num_numerical_cols
    H = 32           # hidden_dim  (C*H = 128 -> lane-dense flattened path)

    key = jax.random.PRNGKey(0)
    k_x, k_m, k_w, k_b, k_e = jax.random.split(key, 5)

    x_numerical = jax.random.normal(k_x, (B, C), dtype=jnp.float32)
    mask = (jax.random.uniform(k_m, (B, C)) > 0.5).astype(jnp.float32)

    # per-column nn.Linear(1, H) -> weight [H,1], bias [H]; stacked to [C, H]
    weights = jax.random.normal(k_w, (C, H), dtype=jnp.float32) * 0.1
    biases = jax.random.normal(k_b, (C, H), dtype=jnp.float32) * 0.1
    mask_embedding = jax.random.normal(k_e, (1, H), dtype=jnp.float32)

    out_masked = jax.block_until_ready(
        feature_tokenizer(x_numerical, weights, biases, mask_embedding, mask))
    out_nomask = jax.block_until_ready(
        feature_tokenizer(x_numerical, weights, biases, mask_embedding, None))

    # Pure-JAX reference.
    feats = x_numerical[:, :, None] * weights[None] + biases[None]        # [B,C,H]
    ref_masked = feats * (1.0 - mask[:, :, None]) \
        + mask_embedding[None] * mask[:, :, None]
    ref_nomask = feats

    assert out_masked.shape == (B, C, H) and out_nomask.shape == (B, C, H)
    assert jnp.allclose(out_masked, ref_masked, atol=1e-5, rtol=1e-5)
    assert jnp.allclose(out_nomask, ref_nomask, atol=1e-5, rtol=1e-5)

    print("KERNEL_OK")
</pallas_src>

<mosaic_0001>
module attributes {stable_mosaic.version = 11 : i64} {
  func.func @_flat_kernel_masked(%arg0: i32, %arg1: memref<8x4xf32, #tpu.memory_space<vmem>>, %arg2: memref<8x4xf32, #tpu.memory_space<vmem>>, %arg3: memref<4x128xf32, #tpu.memory_space<vmem>>, %arg4: memref<4x128xf32, #tpu.memory_space<vmem>>, %arg5: memref<1x128xf32, #tpu.memory_space<vmem>>, %arg6: memref<8x128xf32, #tpu.memory_space<vmem>>) attributes {dimension_semantics = [#tpu.dimension_semantics<parallel>], iteration_bounds = array<i64: 1>, scalar_prefetch = 0 : i64, scratch_operands = 0 : i64, tpu.core_type = #tpu.core_type<tc>, window_params = [{transform_indices = @transform_0, window_bounds = array<i64: 8, 4>}, {transform_indices = @transform_1, window_bounds = array<i64: 8, 4>}, {pipeline_mode = #tpu.pipeline_mode<synchronous>, transform_indices = @transform_2, window_bounds = array<i64: 4, 128>}, {pipeline_mode = #tpu.pipeline_mode<synchronous>, transform_indices = @transform_3, window_bounds = array<i64: 4, 128>}, {pipeline_mode = #tpu.pipeline_mode<synchronous>, transform_indices = @transform_4, window_bounds = array<i64: 1, 128>}, {transform_indices = @transform_5, window_bounds = array<i64: 8, 128>}]} {
    %c0 = arith.constant 0 : index
    %c0_0 = arith.constant 0 : index
    %0 = vector.load %arg1[%c0, %c0_0] : memref<8x4xf32, #tpu.memory_space<vmem>>, vector<8x4xf32>
    %c0_1 = arith.constant 0 : index
    %c0_2 = arith.constant 0 : index
    %1 = vector.load %arg2[%c0_1, %c0_2] : memref<8x4xf32, #tpu.memory_space<vmem>>, vector<8x4xf32>
    %cst = arith.constant 1.000000e+00 : f32
    %2 = vector.broadcast %cst : f32 to vector<8x4xf32>
    %3 = arith.subf %2, %1 : vector<8x4xf32>
    %4 = arith.mulf %0, %3 : vector<8x4xf32>
    %5 = vector.extract_strided_slice %4 {offsets = [0, 0], sizes = [8, 1], strides = [1, 1]} : vector<8x4xf32> to vector<8x1xf32>
    %c0_3 = arith.constant 0 : index
    %c0_4 = arith.constant 0 : index
    %6 = vector.load %arg3[%c0_3, %c0_4] : memref<4x128xf32, #tpu.memory_space<vmem>>, vector<1x128xf32>
    %7 = vector.broadcast %5 : vector<8x1xf32> to vector<8x128xf32>
    %8 = vector.broadcast %6 : vector<1x128xf32> to vector<8x128xf32>
    %9 = arith.mulf %7, %8 : vector<8x128xf32>
    %10 = vector.extract_strided_slice %1 {offsets = [0, 0], sizes = [8, 1], strides = [1, 1]} : vector<8x4xf32> to vector<8x1xf32>
    %c0_5 = arith.constant 0 : index
    %c0_6 = arith.constant 0 : index
    %11 = vector.load %arg4[%c0_5, %c0_6] : memref<4x128xf32, #tpu.memory_space<vmem>>, vector<1x128xf32>
    %12 = vector.broadcast %10 : vector<8x1xf32> to vector<8x128xf32>
    %13 = vector.broadcast %11 : vector<1x128xf32> to vector<8x128xf32>
    %14 = arith.mulf %12, %13 : vector<8x128xf32>
    %15 = arith.addf %9, %14 : vector<8x128xf32>
    %16 = vector.extract_strided_slice %4 {offsets = [0, 1], sizes = [8, 1], strides = [1, 1]} : vector<8x4xf32> to vector<8x1xf32>
    %c1 = arith.constant 1 : index
    %c0_7 = arith.constant 0 : index
    %17 = vector.load %arg3[%c1, %c0_7] : memref<4x128xf32, #tpu.memory_space<vmem>>, vector<1x128xf32>
    %18 = vector.broadcast %16 : vector<8x1xf32> to vector<8x128xf32>
    %19 = vector.broadcast %17 : vector<1x128xf32> to vector<8x128xf32>
    %20 = arith.mulf %18, %19 : vector<8x128xf32>
    %21 = arith.addf %15, %20 : vector<8x128xf32>
    %22 = vector.extract_strided_slice %1 {offsets = [0, 1], sizes = [8, 1], strides = [1, 1]} : vector<8x4xf32> to vector<8x1xf32>
    %c1_8 = arith.constant 1 : index
    %c0_9 = arith.constant 0 : index
    %23 = vector.load %arg4[%c1_8, %c0_9] : memref<4x128xf32, #tpu.memory_space<vmem>>, vector<1x128xf32>
    %24 = vector.broadcast %22 : vector<8x1xf32> to vector<8x128xf32>
    %25 = vector.broadcast %23 : vector<1x128xf32> to vector<8x128xf32>
    %26 = arith.mulf %24, %25 : vector<8x128xf32>
    %27 = arith.addf %21, %26 : vector<8x128xf32>
    %28 = vector.extract_strided_slice %4 {offsets = [0, 2], sizes = [8, 1], strides = [1, 1]} : vector<8x4xf32> to vector<8x1xf32>
    %c2 = arith.constant 2 : index
    %c0_10 = arith.constant 0 : index
    %29 = vector.load %arg3[%c2, %c0_10] : memref<4x128xf32, #tpu.memory_space<vmem>>, vector<1x128xf32>
    %30 = vector.broadcast %28 : vector<8x1xf32> to vector<8x128xf32>
    %31 = vector.broadcast %29 : vector<1x128xf32> to vector<8x128xf32>
    %32 = arith.mulf %30, %31 : vector<8x128xf32>
    %33 = arith.addf %27, %32 : vector<8x128xf32>
    %34 = vector.extract_strided_slice %1 {offsets = [0, 2], sizes = [8, 1], strides = [1, 1]} : vector<8x4xf32> to vector<8x1xf32>
    %c2_11 = arith.constant 2 : index
    %c0_12 = arith.constant 0 : index
    %35 = vector.load %arg4[%c2_11, %c0_12] : memref<4x128xf32, #tpu.memory_space<vmem>>, vector<1x128xf32>
    %36 = vector.broadcast %34 : vector<8x1xf32> to vector<8x128xf32>
    %37 = vector.broadcast %35 : vector<1x128xf32> to vector<8x128xf32>
    %38 = arith.mulf %36, %37 : vector<8x128xf32>
    %39 = arith.addf %33, %38 : vector<8x128xf32>
    %40 = vector.extract_strided_slice %4 {offsets = [0, 3], sizes = [8, 1], strides = [1, 1]} : vector<8x4xf32> to vector<8x1xf32>
    %c3 = arith.constant 3 : index
    %c0_13 = arith.constant 0 : index
    %41 = vector.load %arg3[%c3, %c0_13] : memref<4x128xf32, #tpu.memory_space<vmem>>, vector<1x128xf32>
    %42 = vector.broadcast %40 : vector<8x1xf32> to vector<8x128xf32>
    %43 = vector.broadcast %41 : vector<1x128xf32> to vector<8x128xf32>
    %44 = arith.mulf %42, %43 : vector<8x128xf32>
    %45 = arith.addf %39, %44 : vector<8x128xf32>
    %46 = vector.extract_strided_slice %1 {offsets = [0, 3], sizes = [8, 1], strides = [1, 1]} : vector<8x4xf32> to vector<8x1xf32>
    %c3_14 = arith.constant 3 : index
    %c0_15 = arith.constant 0 : index
    %47 = vector.load %arg4[%c3_14, %c0_15] : memref<4x128xf32, #tpu.memory_space<vmem>>, vector<1x128xf32>
    %48 = vector.broadcast %46 : vector<8x1xf32> to vector<8x128xf32>
    %49 = vector.broadcast %47 : vector<1x128xf32> to vector<8x128xf32>
    %50 = arith.mulf %48, %49 : vector<8x128xf32>
    %51 = arith.addf %45, %50 : vector<8x128xf32>
    %c0_16 = arith.constant 0 : index
    %c0_17 = arith.constant 0 : index
    %52 = vector.load %arg5[%c0_16, %c0_17] : memref<1x128xf32, #tpu.memory_space<vmem>>, vector<1x128xf32>
    %53 = vector.broadcast %52 : vector<1x128xf32> to vector<8x128xf32>
    %54 = arith.addf %51, %53 : vector<8x128xf32>
    %c0_18 = arith.constant 0 : index
    %c0_19 = arith.constant 0 : index
    %55 = vector.load %arg6[%c0_18, %c0_19] : memref<8x128xf32, #tpu.memory_space<vmem>>, vector<8x128xf32>
    tpu.vector_store %arg6[%c0_18, %c0_19], %54 {strides = array<i32>} : memref<8x128xf32, #tpu.memory_space<vmem>>, vector<8x128xf32>,
    return
  }
  func.func @transform_0(%arg0: i32) -> (i32, i32) {
    %c0_i32 = arith.constant 0 : i32
    %c0_i32_0 = arith.constant 0 : i32
    return %arg0, %c0_i32 : i32, i32
  }
  func.func @transform_1(%arg0: i32) -> (i32, i32) {
    %c0_i32 = arith.constant 0 : i32
    %c0_i32_0 = arith.constant 0 : i32
    return %arg0, %c0_i32 : i32, i32
  }
  func.func @transform_2(%arg0: i32) -> (i32, i32) {
    %c0_i32 = arith.constant 0 : i32
    %c0_i32_0 = arith.constant 0 : i32
    %c0_i32_1 = arith.constant 0 : i32
    return %c0_i32, %c0_i32_0 : i32, i32
  }
  func.func @transform_3(%arg0: i32) -> (i32, i32) {
    %c0_i32 = arith.constant 0 : i32
    %c0_i32_0 = arith.constant 0 : i32
    %c0_i32_1 = arith.constant 0 : i32
    return %c0_i32, %c0_i32_0 : i32, i32
  }
  func.func @transform_4(%arg0: i32) -> (i32, i32) {
    %c0_i32 = arith.constant 0 : i32
    %c0_i32_0 = arith.constant 0 : i32
    %c0_i32_1 = arith.constant 0 : i32
    return %c0_i32, %c0_i32_0 : i32, i32
  }
  func.func @transform_5(%arg0: i32) -> (i32, i32) {
    %c0_i32 = arith.constant 0 : i32
    %c0_i32_0 = arith.constant 0 : i32
    return %arg0, %c0_i32 : i32, i32
  }
}

</mosaic_0001>

<llo_original>
// kernel: tpu_custom_call.1
$region0: #{tpu_custom_call.1}
  #allocation0 [shape = 'u32[]', space=smem, size = 0x4, offset = 0x4, fixed_abs, tag = 'smem constant byte address 0x4 - core index']
  #allocation1 [shape = 'u32[144,128]{1,0:T(1,128)}', space=vmem, size = 0x12000, scoped, tag = 'internal scratch']
  %s0 = inlined_call_operand.vmem [shape: f32[8,4], index: 0, kind: input, shape index: {}]
  %s1 = inlined_call_operand.vmem [shape: f32[8,4], index: 1, kind: input, shape index: {}]
  %s2 = inlined_call_operand.vmem [shape: f32[4,128], index: 2, kind: input, shape index: {}]
  %s3 = inlined_call_operand.vmem [shape: f32[4,128], index: 3, kind: input, shape index: {}]
  %s4 = inlined_call_operand.vmem [shape: f32[1,128], index: 4, kind: input, shape index: {}]
  %s5 = inlined_call_operand.hbm [shape: f32[8,128], index: 5, kind: output, shape index: {}]
  %s6 = sld [smem:[#allocation0]]
  $region30: #{tpu_custom_call.1} parent=0
    _
  %s8 = ssub.s32 1, %s6
  %s9 = scalar_select 0, %s8, %s6
  $region1: #{tpu_custom_call.1} parent=0
    #allocation2 [shape = 'u8[4096]{0}', space=vmem, size = 0x1000, scoped, tag = 'output window, operand 0, single buffered']
    #allocation3 [shape = 's32[1]{0}', space=sflag, size = 0x4, scoped, tag = 'scoped memory for tpu_custom_call.1']
    %10 = vsyncpa [#allocation3], 0
    // Predicated region
    $region2: #{tpu_custom_call.1} parent=1 // pred_check
      _
    $region3: #{tpu_custom_call.1} parent=1 // pred_check_branch
      %12 = sbr.rel (0) target = $region5
    $region4: #{tpu_custom_call.1} parent=1 // pred_region
      _
    $region5: #{tpu_custom_call.1} parent=1 // pred_fallthru
      _
    // Predicated region
    $region6: #{tpu_custom_call.1} parent=1 // pred_check
      _
    $region7: #{tpu_custom_call.1} parent=1 // pred_check_branch
      %14 = sbr.rel (0) target = $region9
    $region8: #{tpu_custom_call.1} parent=1 // pred_region
      _
    $region9: #{tpu_custom_call.1} parent=1 // pred_fallthru
      _
    // Predicated region
    $region10: #{tpu_custom_call.1} parent=1 // pred_check
      _
    $region11: #{tpu_custom_call.1} parent=1 // pred_check_branch
      %16 = sbr.rel (0) target = $region13
    $region12: #{tpu_custom_call.1} parent=1 // pred_region
      _
    $region13: #{tpu_custom_call.1} parent=1 // pred_fallthru
      _
    // Predicated region
    $region14: #{tpu_custom_call.1} parent=1 // pred_check
      _
    $region15: #{tpu_custom_call.1} parent=1 // pred_check_branch
      %18 = sbr.rel (0) target = $region17
    $region16: #{tpu_custom_call.1} parent=1 // pred_region
      _
    $region17: #{tpu_custom_call.1} parent=1 // pred_fallthru
      _
    // Predicated region
    $region18: #{tpu_custom_call.1} parent=1 // pred_check
      _
    $region19: #{tpu_custom_call.1} parent=1 // pred_check_branch
      %20 = sbr.rel (0) target = $region21
    $region20: #{tpu_custom_call.1} parent=1 // pred_region
      _
    $region21: #{tpu_custom_call.1} parent=1 // pred_fallthru
      _
    %v21 = vld [vmem:[%s0] sm:$0xff]
    %v22 = vld [vmem:[%s1] sm:$0xff]
    %v23 = vsub.f32 1.0, %v22
    %v24 = vmul.f32 %v21, %v23
    %v25 = vld [vmem:[%s2] sm:$0x1]
    %27 = vset.pattern.permute.xlu0 0
    %28 = vperm.xlu0 %27, %v24
    %v29 = vpop.permute.xlu0 %28
    %v31 = vlaneseq
    %v32 = vshrl.u32 %v31, 7
    %v33 = vsub.s32 0, %v32
    %v34 = vrot.slane %v25, %v33
    %v35 = vmul.f32 %v29, %v34
    %v36 = vld [vmem:[%s3] sm:$0x1]
    %38 = vset.pattern.permute.xlu0 0
    %39 = vperm.xlu0 %38, %v22
    %v40 = vpop.permute.xlu0 %39
    %v42 = vlaneseq
    %v43 = vshrl.u32 %v42, 7
    %v44 = vsub.s32 0, %v43
    %v45 = vrot.slane %v36, %v44
    %v46 = vmul.f32 %v40, %v45
    %v47 = vadd.f32 %v35, %v46
    %v48 = vld [vmem:[%s2 + $0x1] sm:$0x1]
    %49 = vset.pattern.permute.xlu0 1
    %50 = vperm.xlu0 %49, %v24
    %v51 = vpop.permute.xlu0 %50
    %v53 = vlaneseq
    %v54 = vshrl.u32 %v53, 7
    %v55 = vsub.s32 0, %v54
    %v56 = vrot.slane %v48, %v55
    %v57 = vmul.f32 %v51, %v56
    %v58 = vadd.f32 %v47, %v57
    %v59 = vld [vmem:[%s3 + $0x1] sm:$0x1]
    %60 = vset.pattern.permute.xlu0 1
    %61 = vperm.xlu0 %60, %v22
    %v62 = vpop.permute.xlu0 %61
    %v64 = vlaneseq
    %v65 = vshrl.u32 %v64, 7
    %v66 = vsub.s32 0, %v65
    %v67 = vrot.slane %v59, %v66
    %v68 = vmul.f32 %v62, %v67
    %v69 = vadd.f32 %v58, %v68
    %v70 = vld [vmem:[%s2 + $0x2] sm:$0x1]
    %71 = vset.pattern.permute.xlu0 2
    %72 = vperm.xlu0 %71, %v24
    %v73 = vpop.permute.xlu0 %72
    %v75 = vlaneseq
    %v76 = vshrl.u32 %v75, 7
    %v77 = vsub.s32 0, %v76
    %v78 = vrot.slane %v70, %v77
    %v79 = vmul.f32 %v73, %v78
    %v80 = vadd.f32 %v69, %v79
    %v81 = vld [vmem:[%s3 + $0x2] sm:$0x1]
    %82 = vset.pattern.permute.xlu0 2
    %83 = vperm.xlu0 %82, %v22
    %v84 = vpop.permute.xlu0 %83
    %v86 = vlaneseq
    %v87 = vshrl.u32 %v86, 7
    %v88 = vsub.s32 0, %v87
    %v89 = vrot.slane %v81, %v88
    %v90 = vmul.f32 %v84, %v89
    %v91 = vadd.f32 %v80, %v90
    %v92 = vld [vmem:[%s2 + $0x3] sm:$0x1]
    %93 = vset.pattern.permute.xlu0 3
    %94 = vperm.xlu0 %93, %v24
    %v95 = vpop.permute.xlu0 %94
    %v97 = vlaneseq
    %v98 = vshrl.u32 %v97, 7
    %v99 = vsub.s32 0, %v98
    %v100 = vrot.slane %v92, %v99
    %v101 = vmul.f32 %v95, %v100
    %v102 = vadd.f32 %v91, %v101
    %v103 = vld [vmem:[%s3 + $0x3] sm:$0x1]
    %104 = vset.pattern.permute.xlu0 3
    %105 = vperm.xlu0 %104, %v22
    %v106 = vpop.permute.xlu0 %105
    %v108 = vlaneseq
    %v109 = vshrl.u32 %v108, 7
    %v110 = vsub.s32 0, %v109
    %v111 = vrot.slane %v103, %v110
    %v112 = vmul.f32 %v106, %v111
    %v113 = vadd.f32 %v102, %v112
    %v114 = vld [vmem:[%s4] sm:$0x1]
    %v116 = vlaneseq
    %v117 = vshrl.u32 %v116, 7
    %v118 = vsub.s32 0, %v117
    %v119 = vrot.slane %v114, %v118
    %v121 = vadd.f32 %v113, %v119
    %122 = vst [vmem:[#allocation2] sm:$0xff] %v121
    // Predicated region
    $region22: #{tpu_custom_call.1} parent=1 // pred_check
      _
    $region23: #{tpu_custom_call.1} parent=1 // pred_check_branch
      %124 = sbr.rel (0) target = $region25
    $region24: #{tpu_custom_call.1} parent=1 // pred_region
      %s126 = ssub.s32 128, 128
      %127 = vsyncadd [#allocation3], %s126
      %s129 = sshll.u32 [#allocation2], 4
      %s130 = int_to_ptr.vmem [resolvable:$true] %s129
      %132 = dma.vmem_to_hbm [thread:$0]  %s130, 128, %s5, [#allocation3]
    $region25: #{tpu_custom_call.1} parent=1 // pred_fallthru
      _
    // Predicated region
    $region26: #{tpu_custom_call.1} parent=1 // pred_check
      _
    $region27: #{tpu_custom_call.1} parent=1 // pred_check_branch
      %134 = sbr.rel (0) target = $region29
    $region28: #{tpu_custom_call.1} parent=1 // pred_region
      %135 = dma.done [#allocation3], 128
    $region29: #{tpu_custom_call.1} parent=1 // pred_fallthru
      _
    %136 = vsyncpa [#allocation3], 1

</llo_original>
